<compile_context>
chip_gen: v5e
topology: v5e:2x2
jax: 0.10.0
libtpu: 0.0.40
codegen_flags: <defaults>
</compile_context>

<pallas_src>
import functools

import jax
import jax.numpy as jnp
from jax import lax
from jax.experimental import pallas as pl
from jax.experimental.pallas import tpu as pltpu

_LANES = 128


def _quantized_activation_kernel(x_ref, g_ref, o_ref, *, tau, hard, num_groups,
                                 group_size):
    """x_ref/g_ref/o_ref: (block_rows, num_groups * group_size).

    Each contiguous group of `group_size` lanes is one original logits row; the
    softmax / argmax reduction is done per group.
    """
    z = x_ref[...].astype(jnp.float32) + g_ref[...].astype(jnp.float32)

    outs = []
    for gi in range(num_groups):
        zg = z[:, gi * group_size:(gi + 1) * group_size]          # (B, group_size)
        if hard:
            # One-hot of argmax(z); first maximal index wins (matches torch.argmax).
            m = jnp.max(zg, axis=-1, keepdims=True)
            idx = lax.broadcasted_iota(jnp.int32, zg.shape, dimension=1)
            first = jnp.min(jnp.where(zg >= m, idx, jnp.int32(group_size)),
                            axis=-1, keepdims=True)
            outs.append((idx == first).astype(jnp.float32))
        else:
            s = (zg - jnp.max(zg, axis=-1, keepdims=True)) * jnp.float32(1.0 / tau)
            es = jnp.exp(s)
            outs.append(es / jnp.sum(es, axis=-1, keepdims=True))

    out = outs[0] if num_groups == 1 else jnp.concatenate(outs, axis=-1)
    o_ref[...] = out.astype(o_ref.dtype)


@functools.partial(jax.jit, static_argnames=("tau", "hard", "block_rows"))
def quantized_activation(x, key, *, tau=0.001, hard=True, block_rows=1024):
    """x: [N, F] or [N, F, 1] logits; returns [N, F, 1] like the PyTorch module."""
    squeeze_in = x.ndim == 3 and x.shape[-1] == 1
    x2 = x[..., 0] if squeeze_in else x
    n, f = x2.shape

    # Gumbel(0,1) noise drawn in the wrapper (platform-portable, same distribution
    # as torch.nn.functional.gumbel_softmax's sampler).
    g = jax.random.gumbel(key, (n, f), dtype=jnp.float32)

    # Lane-dense packing: view [N, F] as [N*F/128, 128] when possible so every
    # vector load/store uses all 128 lanes.
    if f < _LANES and _LANES % f == 0 and (n * f) % _LANES == 0:
        num_groups = _LANES // f
        packed_rows = (n * f) // _LANES
        xp = x2.reshape(packed_rows, _LANES)
        gp = g.reshape(packed_rows, _LANES)
    else:
        num_groups = 1
        packed_rows = n
        xp, gp = x2, g
    width = xp.shape[1]
    group_size = width // num_groups

    # Big row tiles; if the tile is smaller than the array it must be a multiple of 8.
    br = min(block_rows, packed_rows)
    if br < packed_rows:
        br = max(8, (br // 8) * 8)
    grid = (pl.cdiv(packed_rows, br),)

    cost = pl.CostEstimate(
        flops=8 * n * f,
        transcendentals=0 if hard else n * f,
        bytes_accessed=3 * n * f * 4,
    )

    out = pl.pallas_call(
        functools.partial(_quantized_activation_kernel, tau=float(tau),
                          hard=bool(hard), num_groups=num_groups,
                          group_size=group_size),
        out_shape=jax.ShapeDtypeStruct((packed_rows, width), x2.dtype),
        grid=grid,
        in_specs=[pl.BlockSpec((br, width), lambda i: (i, 0)),
                  pl.BlockSpec((br, width), lambda i: (i, 0))],
        out_specs=pl.BlockSpec((br, width), lambda i: (i, 0)),
        compiler_params=pltpu.CompilerParams(
            dimension_semantics=("parallel",)),   # rows independent -> megacore OK
        cost_estimate=cost,
    )(xp, gp)

    out = out.reshape(n, f)
    return out[..., None]   # unsqueeze(dim=-1), matching the PyTorch module


if __name__ == "__main__":
    # Module defaults: activation='gumbel_softmax', tau=0.001, hard_sampling=True.
    # (The *0.1 tau rescale only applies to the 'softmax' branch.)
    TAU = 0.001
    HARD = True

    key = jax.random.PRNGKey(0)
    xkey, nkey = jax.random.split(key)
    num_nodes, node_features = 8, 32
    x = jax.random.normal(xkey, (num_nodes, node_features), dtype=jnp.float32)

    y = quantized_activation(x, nkey, tau=TAU, hard=HARD)
    y = jax.block_until_ready(y)

    # Shape check.
    assert y.shape == (num_nodes, node_features, 1), y.shape
    rows = y[..., 0]

    # hard=True -> exact one-hot rows.
    assert bool(jnp.all((rows == 0.0) | (rows == 1.0))), "expected 0/1 entries"
    assert bool(jnp.allclose(jnp.sum(rows, axis=-1), 1.0)), "rows must sum to 1"

    # Cross-check against a pure-JAX reference using the identical noise draw.
    g_ref = jax.random.gumbel(nkey, (num_nodes, node_features), dtype=jnp.float32)
    ref = jax.nn.one_hot(jnp.argmax(x + g_ref, axis=-1), node_features,
                         dtype=jnp.float32)
    assert bool(jnp.array_equal(rows, ref)), "mismatch vs. JAX reference"

    print("KERNEL_OK")
</pallas_src>

<mosaic_0001>
module attributes {stable_mosaic.version = 11 : i64} {
  func.func @_quantized_activation_kernel(%arg0: i32, %arg1: memref<2x128xf32, #tpu.memory_space<vmem>>, %arg2: memref<2x128xf32, #tpu.memory_space<vmem>>, %arg3: memref<2x128xf32, #tpu.memory_space<vmem>>) attributes {dimension_semantics = [#tpu.dimension_semantics<parallel>], iteration_bounds = array<i64: 1>, scalar_prefetch = 0 : i64, scratch_operands = 0 : i64, tpu.core_type = #tpu.core_type<tc>, window_params = [{transform_indices = @transform_0, window_bounds = array<i64: 2, 128>}, {transform_indices = @transform_1, window_bounds = array<i64: 2, 128>}, {transform_indices = @transform_2, window_bounds = array<i64: 2, 128>}]} {
    %c0 = arith.constant 0 : index
    %c0_0 = arith.constant 0 : index
    %0 = vector.load %arg1[%c0, %c0_0] : memref<2x128xf32, #tpu.memory_space<vmem>>, vector<2x128xf32>
    %c0_1 = arith.constant 0 : index
    %c0_2 = arith.constant 0 : index
    %1 = vector.load %arg2[%c0_1, %c0_2] : memref<2x128xf32, #tpu.memory_space<vmem>>, vector<2x128xf32>
    %2 = arith.addf %0, %1 : vector<2x128xf32>
    %3 = vector.extract_strided_slice %2 {offsets = [0, 0], sizes = [2, 32], strides = [1, 1]} : vector<2x128xf32> to vector<2x32xf32>
    %cst = arith.constant dense<0xFF800000> : vector<2xf32>
    %4 = vector.multi_reduction <maximumf>, %3, %cst [1] : vector<2x32xf32> to vector<2xf32>
    %5 = vector.shape_cast %4 : vector<2xf32> to vector<2x1xf32>
    %6 = tpu.iota {dimensions = array<i32: 1>} : vector<2x32xi32>
    %7 = vector.broadcast %5 : vector<2x1xf32> to vector<2x32xf32>
    %8 = arith.cmpf oge, %3, %7 : vector<2x32xf32>
    %c32_i32 = arith.constant 32 : i32
    %9 = vector.broadcast %c32_i32 : i32 to vector<2x32xi32>
    %10 = arith.select %8, %6, %9 : vector<2x32xi1>, vector<2x32xi32>
    %cst_3 = arith.constant dense<2147483647> : vector<2xi32>
    %11 = vector.multi_reduction <minsi>, %10, %cst_3 [1] : vector<2x32xi32> to vector<2xi32>
    %12 = vector.shape_cast %11 : vector<2xi32> to vector<2x1xi32>
    %13 = vector.broadcast %12 : vector<2x1xi32> to vector<2x32xi32>
    %14 = arith.cmpi eq, %6, %13 : vector<2x32xi32>
    %15 = arith.extui %14 : vector<2x32xi1> to vector<2x32xi32>
    %16 = arith.sitofp %15 : vector<2x32xi32> to vector<2x32xf32>
    %17 = vector.extract_strided_slice %2 {offsets = [0, 32], sizes = [2, 32], strides = [1, 1]} : vector<2x128xf32> to vector<2x32xf32>
    %cst_4 = arith.constant dense<0xFF800000> : vector<2xf32>
    %18 = vector.multi_reduction <maximumf>, %17, %cst_4 [1] : vector<2x32xf32> to vector<2xf32>
    %19 = vector.shape_cast %18 : vector<2xf32> to vector<2x1xf32>
    %20 = tpu.iota {dimensions = array<i32: 1>} : vector<2x32xi32>
    %21 = vector.broadcast %19 : vector<2x1xf32> to vector<2x32xf32>
    %22 = arith.cmpf oge, %17, %21 : vector<2x32xf32>
    %c32_i32_5 = arith.constant 32 : i32
    %23 = vector.broadcast %c32_i32_5 : i32 to vector<2x32xi32>
    %24 = arith.select %22, %20, %23 : vector<2x32xi1>, vector<2x32xi32>
    %cst_6 = arith.constant dense<2147483647> : vector<2xi32>
    %25 = vector.multi_reduction <minsi>, %24, %cst_6 [1] : vector<2x32xi32> to vector<2xi32>
    %26 = vector.shape_cast %25 : vector<2xi32> to vector<2x1xi32>
    %27 = vector.broadcast %26 : vector<2x1xi32> to vector<2x32xi32>
    %28 = arith.cmpi eq, %20, %27 : vector<2x32xi32>
    %29 = arith.extui %28 : vector<2x32xi1> to vector<2x32xi32>
    %30 = arith.sitofp %29 : vector<2x32xi32> to vector<2x32xf32>
    %31 = vector.extract_strided_slice %2 {offsets = [0, 64], sizes = [2, 32], strides = [1, 1]} : vector<2x128xf32> to vector<2x32xf32>
    %cst_7 = arith.constant dense<0xFF800000> : vector<2xf32>
    %32 = vector.multi_reduction <maximumf>, %31, %cst_7 [1] : vector<2x32xf32> to vector<2xf32>
    %33 = vector.shape_cast %32 : vector<2xf32> to vector<2x1xf32>
    %34 = tpu.iota {dimensions = array<i32: 1>} : vector<2x32xi32>
    %35 = vector.broadcast %33 : vector<2x1xf32> to vector<2x32xf32>
    %36 = arith.cmpf oge, %31, %35 : vector<2x32xf32>
    %c32_i32_8 = arith.constant 32 : i32
    %37 = vector.broadcast %c32_i32_8 : i32 to vector<2x32xi32>
    %38 = arith.select %36, %34, %37 : vector<2x32xi1>, vector<2x32xi32>
    %cst_9 = arith.constant dense<2147483647> : vector<2xi32>
    %39 = vector.multi_reduction <minsi>, %38, %cst_9 [1] : vector<2x32xi32> to vector<2xi32>
    %40 = vector.shape_cast %39 : vector<2xi32> to vector<2x1xi32>
    %41 = vector.broadcast %40 : vector<2x1xi32> to vector<2x32xi32>
    %42 = arith.cmpi eq, %34, %41 : vector<2x32xi32>
    %43 = arith.extui %42 : vector<2x32xi1> to vector<2x32xi32>
    %44 = arith.sitofp %43 : vector<2x32xi32> to vector<2x32xf32>
    %45 = vector.extract_strided_slice %2 {offsets = [0, 96], sizes = [2, 32], strides = [1, 1]} : vector<2x128xf32> to vector<2x32xf32>
    %cst_10 = arith.constant dense<0xFF800000> : vector<2xf32>
    %46 = vector.multi_reduction <maximumf>, %45, %cst_10 [1] : vector<2x32xf32> to vector<2xf32>
    %47 = vector.shape_cast %46 : vector<2xf32> to vector<2x1xf32>
    %48 = tpu.iota {dimensions = array<i32: 1>} : vector<2x32xi32>
    %49 = vector.broadcast %47 : vector<2x1xf32> to vector<2x32xf32>
    %50 = arith.cmpf oge, %45, %49 : vector<2x32xf32>
    %c32_i32_11 = arith.constant 32 : i32
    %51 = vector.broadcast %c32_i32_11 : i32 to vector<2x32xi32>
    %52 = arith.select %50, %48, %51 : vector<2x32xi1>, vector<2x32xi32>
    %cst_12 = arith.constant dense<2147483647> : vector<2xi32>
    %53 = vector.multi_reduction <minsi>, %52, %cst_12 [1] : vector<2x32xi32> to vector<2xi32>
    %54 = vector.shape_cast %53 : vector<2xi32> to vector<2x1xi32>
    %55 = vector.broadcast %54 : vector<2x1xi32> to vector<2x32xi32>
    %56 = arith.cmpi eq, %48, %55 : vector<2x32xi32>
    %57 = arith.extui %56 : vector<2x32xi1> to vector<2x32xi32>
    %58 = arith.sitofp %57 : vector<2x32xi32> to vector<2x32xf32>
    %59 = tpu.concatenate %16, %30, %44, %58 in 1 : vector<2x32xf32>, vector<2x32xf32>, vector<2x32xf32>, vector<2x32xf32> -> vector<2x128xf32>
    %c0_13 = arith.constant 0 : index
    %c0_14 = arith.constant 0 : index
    %60 = vector.load %arg3[%c0_13, %c0_14] : memref<2x128xf32, #tpu.memory_space<vmem>>, vector<2x128xf32>
    tpu.vector_store %arg3[%c0_13, %c0_14], %59 {strides = array<i32>} : memref<2x128xf32, #tpu.memory_space<vmem>>, vector<2x128xf32>,
    return
  }
  func.func @transform_0(%arg0: i32) -> (i32, i32) {
    %c0_i32 = arith.constant 0 : i32
    %c0_i32_0 = arith.constant 0 : i32
    return %arg0, %c0_i32 : i32, i32
  }
  func.func @transform_1(%arg0: i32) -> (i32, i32) {
    %c0_i32 = arith.constant 0 : i32
    %c0_i32_0 = arith.constant 0 : i32
    return %arg0, %c0_i32 : i32, i32
  }
  func.func @transform_2(%arg0: i32) -> (i32, i32) {
    %c0_i32 = arith.constant 0 : i32
    %c0_i32_0 = arith.constant 0 : i32
    return %arg0, %c0_i32 : i32, i32
  }
}

</mosaic_0001>

<llo_original>
// kernel: quantized_activation.1
$region0: #{quantized_activation.1}
  #allocation0 [shape = 'u32[]', space=smem, size = 0x4, offset = 0x4, fixed_abs, tag = 'smem constant byte address 0x4 - core index']
  #allocation1 [shape = 'u32[72,128]{1,0:T(1,128)}', space=vmem, size = 0x9000, scoped, tag = 'internal scratch']
  %s0 = inlined_call_operand.vmem [shape: f32[2,128], index: 0, kind: input, shape index: {}]
  %s1 = inlined_call_operand.vmem [shape: f32[2,128], index: 1, kind: input, shape index: {}]
  %s2 = inlined_call_operand.vmem [shape: f32[2,128], index: 2, kind: output, shape index: {}]
  %s3 = sld [smem:[#allocation0]]
  $region18: #{quantized_activation.1} parent=0
    _
  %s5 = ssub.s32 1, %s3
  %s6 = scalar_select 0, %s5, %s3
  // Predicated region
  $region2: #{quantized_activation.1} parent=0 // pred_check
    _
  $region3: #{quantized_activation.1} parent=0 // pred_check_branch
    %8 = sbr.rel (0) target = $region5
  $region4: #{quantized_activation.1} parent=0 // pred_region
    _
  $region5: #{quantized_activation.1} parent=0 // pred_fallthru
    _
  // Predicated region
  $region6: #{quantized_activation.1} parent=0 // pred_check
    _
  $region7: #{quantized_activation.1} parent=0 // pred_check_branch
    %10 = sbr.rel (0) target = $region9
  $region8: #{quantized_activation.1} parent=0 // pred_region
    _
  $region9: #{quantized_activation.1} parent=0 // pred_fallthru
    _
  %v11 = vld [vmem:[%s0] sm:$0x3]
  %v12 = vld [vmem:[%s1] sm:$0x3]
  %v13 = vadd.f32 %v11, %v12
  %vm14 = vcmask 254976
  %v15 = vsel %vm14, %v13, -inf
  %16 = vmax.xlane.f32.xlu0 %v15
  %v17 = vpop.xlane.xlu0 %16
  %v18 = vlaneseq
  %v19 = vand.u32 %v18, 127
  %vm20 = vcmp.ge.f32.partialorder %v13, %v17
  %v21 = vsel %vm20, %v19, 32
  %v22 = vsel %vm14, %v21, 2147483647
  %v23 = vand.u32 %v22, 65535
  %v24 = vshra.s32 %v22, 16
  %v25 = vcvt.s32.f32 %v23
  %v26 = vcvt.s32.f32 %v24
  %27 = vmin.xlane.f32.xlu0 %v26
  %v28 = vpop.xlane.xlu0 %27
  %vm29 = vcmp.eq.f32.partialorder %v26, %v28
  %v30 = vsel %vm29, %v25, inf
  %31 = vmin.xlane.f32.xlu0 %v30
  %v32 = vpop.xlane.xlu0 %31
  %v33 = vcvt.f32.s32 %v32
  %v34 = vcvt.f32.s32 %v28
  %v35 = vshll.u32 %v34, 16
  %v36 = vadd.s32 %v35, %v33
  %vm37 = vcmp.eq.s32.totalorder %v19, %v36
  %v38 = vsel %vm37, 1, 0
  %v39 = vcvt.s32.f32 %v38
  %vm40 = vcmask 517376
  %v41 = vsel %vm40, %v13, -inf
  %42 = vmax.xlane.f32.xlu0 %v41
  %v43 = vpop.xlane.xlu0 %42
  %vm44 = vcmp.ge.f32.partialorder %v13, %v43
  %45 = vrot.lane.b32.xlu0 %v19, 32
  %v46 = vpop.permute.xlu0 %45
  %v47 = vsel %vm44, %v46, 32
  %v48 = vsel %vm40, %v47, 2147483647
  %v49 = vand.u32 %v48, 65535
  %v50 = vshra.s32 %v48, 16
  %v51 = vcvt.s32.f32 %v49
  %v52 = vcvt.s32.f32 %v50
  %53 = vmin.xlane.f32.xlu0 %v52
  %v54 = vpop.xlane.xlu0 %53
  %vm55 = vcmp.eq.f32.partialorder %v52, %v54
  %v56 = vsel %vm55, %v51, inf
  %57 = vmin.xlane.f32.xlu0 %v56
  %v58 = vpop.xlane.xlu0 %57
  %v59 = vcvt.f32.s32 %v58
  %v60 = vcvt.f32.s32 %v54
  %v61 = vshll.u32 %v60, 16
  %v62 = vadd.s32 %v61, %v59
  %vm63 = vcmp.eq.s32.totalorder %v19, %v62
  %v64 = vsel %vm63, 1, 0
  %v65 = vcvt.s32.f32 %v64
  %vm66 = vcmask 779776
  %v67 = vsel %vm66, %v13, -inf
  %68 = vmax.xlane.f32.xlu0 %v67
  %v69 = vpop.xlane.xlu0 %68
  %vm70 = vcmp.ge.f32.partialorder %v13, %v69
  %71 = vrot.lane.b32.xlu0 %v19, 64
  %v72 = vpop.permute.xlu0 %71
  %v73 = vsel %vm70, %v72, 32
  %v74 = vsel %vm66, %v73, 2147483647
  %v75 = vand.u32 %v74, 65535
  %v76 = vshra.s32 %v74, 16
  %v77 = vcvt.s32.f32 %v75
  %v78 = vcvt.s32.f32 %v76
  %79 = vmin.xlane.f32.xlu0 %v78
  %v80 = vpop.xlane.xlu0 %79
  %vm81 = vcmp.eq.f32.partialorder %v78, %v80
  %v82 = vsel %vm81, %v77, inf
  %83 = vmin.xlane.f32.xlu0 %v82
  %v84 = vpop.xlane.xlu0 %83
  %v85 = vcvt.f32.s32 %v84
  %v86 = vcvt.f32.s32 %v80
  %v87 = vshll.u32 %v86, 16
  %v88 = vadd.s32 %v87, %v85
  %vm89 = vcmp.eq.s32.totalorder %v19, %v88
  %v90 = vsel %vm89, 1, 0
  %v91 = vcvt.s32.f32 %v90
  %vm92 = vcmask 1042176
  %v93 = vsel %vm92, %v13, -inf
  %94 = vmax.xlane.f32.xlu0 %v93
  %v95 = vpop.xlane.xlu0 %94
  %vm96 = vcmp.ge.f32.partialorder %v13, %v95
  %97 = vrot.lane.b32.xlu0 %v19, 96
  %v98 = vpop.permute.xlu0 %97
  %v99 = vsel %vm96, %v98, 32
  %v100 = vsel %vm92, %v99, 2147483647
  %v101 = vand.u32 %v100, 65535
  %v102 = vshra.s32 %v100, 16
  %v103 = vcvt.s32.f32 %v101
  %v104 = vcvt.s32.f32 %v102
  %105 = vmin.xlane.f32.xlu0 %v104
  %v106 = vpop.xlane.xlu0 %105
  %vm107 = vcmp.eq.f32.partialorder %v104, %v106
  %v108 = vsel %vm107, %v103, inf
  %109 = vmin.xlane.f32.xlu0 %v108
  %v110 = vpop.xlane.xlu0 %109
  %v111 = vcvt.f32.s32 %v110
  %v112 = vcvt.f32.s32 %v106
  %v113 = vshll.u32 %v112, 16
  %v114 = vadd.s32 %v113, %v111
  %vm115 = vcmp.eq.s32.totalorder %v19, %v114
  %v116 = vsel %vm115, 1, 0
  %v117 = vcvt.s32.f32 %v116
  %119 = vrot.lane.b32.xlu0 %v65, 32
  %v120 = vpop.permute.xlu0 %119
  %123 = vrot.lane.b32.xlu0 %v91, 64
  %v124 = vpop.permute.xlu0 %123
  %127 = vrot.lane.b32.xlu0 %v117, 96
  %v128 = vpop.permute.xlu0 %127
  %vm130 = vcmask 261120
  %v131 = vsel %vm130, %v39, %v120
  %vm132 = vcmask 523264
  %v133 = vsel %vm132, %v131, %v124
  %vm134 = vcmask 785408
  %v135 = vsel %vm134, %v133, %v128
  %136 = vst [vmem:[%s2] sm:$0x3] %v135
  // Predicated region
  $region10: #{quantized_activation.1} parent=0 // pred_check
    _
  $region11: #{quantized_activation.1} parent=0 // pred_check_branch
    %138 = sbr.rel (0) target = $region13
  $region12: #{quantized_activation.1} parent=0 // pred_region
    _
  $region13: #{quantized_activation.1} parent=0 // pred_fallthru
    _
  // Predicated region
  $region14: #{quantized_activation.1} parent=0 // pred_check
    _
  $region15: #{quantized_activation.1} parent=0 // pred_check_branch
    %140 = sbr.rel (0) target = $region17
  $region16: #{quantized_activation.1} parent=0 // pred_region
    _
  $region17: #{quantized_activation.1} parent=0 // pred_fallthru
    _

</llo_original>
